<compile_context>
chip_gen: v6e
topology: v6e:2x2x1
jax: 0.10.0
libtpu: 0.0.40
codegen_flags: <defaults>
</compile_context>

<pallas_src>
import jax
import jax.numpy as jnp
from jax.experimental import pallas as pl
from jax.experimental.pallas import tpu as pltpu

LANE = 128      # hidden feature dims padded to lane width (VMEM-only)
SUBLANE = 8     # f32 sublane count; batch tile is a multiple of this
MAX_TB = 1024   # batch tile cap (sweep 512/1024/2048 per generation; v5e may prefer 256)


def _round_up(n, m):
    return ((n + m - 1) // m) * m


def _batch_dim_semantics():
    """Semantics for the batch grid axis.

    On multi-TensorCore chips (v7x: 2 TCs/chip) CORE_PARALLEL shards the batch
    tiles across cores; elsewhere plain "parallel" (equivalent on 1-TC
    v5e/v6e). Detection is best-effort and guarded so it never breaks
    compilation or interpret mode.
    """
    try:
        info = pltpu.get_tpu_info()
        cores = 1
        for name in ("num_cores", "cores_per_chip", "tensorcores_per_chip"):
            cores = max(cores, int(getattr(info, name, 0) or 0))
        if cores > 1 and hasattr(pltpu, "CORE_PARALLEL"):
            return (pltpu.CORE_PARALLEL,)
    except Exception:
        pass
    return ("parallel",)


def actor_kernel(x_ref,
                 w1_ref, b1_ref, w2_ref, b2_ref, w3_ref, b3_ref,
                 w4_ref, b4_ref, w5_ref, b5_ref, w6_ref, b6_ref,
                 o_ref):
    """One batch tile, all six layers fused in VMEM."""

    def linear_bf16(h, w_ref, b_ref):
        # bf16 operands on the MXU, f32 accumulation; bias add stays f32.
        return jnp.dot(h.astype(jnp.bfloat16), w_ref[...],
                       preferred_element_type=jnp.float32) + b_ref[...]

    x = x_ref[...]                                         # f32 (TB, state_dim)
    h = jnp.maximum(linear_bf16(x, w1_ref, b1_ref), 0.0)   # fc1 + relu  -> (TB, 128)
    out = h
    h = jnp.maximum(linear_bf16(h, w2_ref, b2_ref), 0.0)   # fc2 + relu
    h = jnp.maximum(linear_bf16(h, w3_ref, b3_ref), 0.0)   # fc3 + relu
    out = out + h                                          # residual 1
    h = jnp.maximum(linear_bf16(out, w4_ref, b4_ref), 0.0) # fc4 + relu
    h = jnp.maximum(linear_bf16(h, w5_ref, b5_ref), 0.0)   # fc5 + relu
    x6 = out + h                                           # residual 2

    # fc6 in f32 (parity with the torch reference), real output width -> no
    # padded-logit masking needed. Numerically stable softmax, exact divide.
    logits = jnp.dot(x6, w6_ref[...],
                     preferred_element_type=jnp.float32) + b6_ref[...]
    m = jnp.max(logits, axis=-1, keepdims=True)
    e = jnp.exp(logits - m)
    denom = jnp.sum(e, axis=-1, keepdims=True)
    o_ref[...] = (e / denom).astype(o_ref.dtype)


def prepare_params(params):
    """Pad weights/biases to lane-dense VMEM shapes; do this ONCE per param set.

    params: flat tuple (w1, b1, ..., w6, b6), weights [in, out], biases [1, out].
      * fc1 keeps its real input dim (x is streamed at real width).
      * fc6 keeps its real output dim (output is written at real width) and
        stays f32; fc1..fc5 weights are cast to bf16.
      * All hidden dims are padded to 128 lanes with zeros (exact under ReLU
        and the residual adds).
    """
    ws, bs = params[0::2], params[1::2]
    n_layers = len(ws)
    padded = []
    for li, (w, b) in enumerate(zip(ws, bs)):
        first, last = (li == 0), (li == n_layers - 1)
        in_p = w.shape[0] if first else _round_up(w.shape[0], LANE)
        out_p = w.shape[1] if last else _round_up(w.shape[1], LANE)
        wp = jnp.pad(w, ((0, in_p - w.shape[0]), (0, out_p - w.shape[1])))
        bp = jnp.pad(b, ((0, 0), (0, out_p - b.shape[1])))
        w_dtype = jnp.float32 if last else jnp.bfloat16
        padded += [wp.astype(w_dtype), bp.astype(jnp.float32)]
    return tuple(padded)


@jax.jit
def actor_forward(x, padded_params):
    """x: [batch, state_dim] f32. Returns softmax probabilities [batch, output_dim]."""
    batch, state_dim = x.shape
    output_dim = padded_params[-1].shape[-1]

    # Balanced, sublane-aligned batch tile: padded work < 1 sublane row/tile.
    num_tiles = pl.cdiv(batch, MAX_TB)
    tb = _round_up(pl.cdiv(batch, num_tiles), SUBLANE)
    b_p = _round_up(batch, tb)

    xp = x.astype(jnp.float32)
    if b_p != batch:
        xp = jnp.pad(xp, ((0, b_p - batch), (0, 0)))

    grid = (b_p // tb,)
    # Input/output streamed at REAL feature widths (last dim == full array dim
    # is a legal BlockSpec); hidden padding lives only in VMEM.
    x_spec = pl.BlockSpec((tb, state_dim), lambda i: (i, 0))
    out_spec = pl.BlockSpec((tb, output_dim), lambda i: (i, 0))
    # Constant index_map -> weights/biases stay resident in VMEM across steps.
    param_specs = [pl.BlockSpec(p.shape, lambda i: (0, 0)) for p in padded_params]

    # Advisory cost for XLA's scheduler.
    in_dims = [w.shape[0] for w in padded_params[0::2]]
    out_dims = [w.shape[1] for w in padded_params[0::2]]
    flops = 2 * b_p * sum(i * o for i, o in zip(in_dims, out_dims))
    bytes_accessed = (xp.size * 4 + b_p * output_dim * 4
                      + sum(int(w.size) * w.dtype.itemsize + int(b.size) * 4
                            for w, b in zip(padded_params[0::2],
                                            padded_params[1::2])))
    transcendentals = b_p * output_dim  # exp per real logit

    probs_p = pl.pallas_call(
        actor_kernel,
        out_shape=jax.ShapeDtypeStruct((b_p, output_dim), jnp.float32),
        grid=grid,
        in_specs=[x_spec] + param_specs,
        out_specs=out_spec,
        compiler_params=pltpu.CompilerParams(
            dimension_semantics=_batch_dim_semantics()),
        cost_estimate=pl.CostEstimate(flops=flops,
                                      transcendentals=transcendentals,
                                      bytes_accessed=bytes_accessed),
    )(xp, *padded_params)

    return probs_p if b_p == batch else probs_p[:batch]


def init_params(key, state_dim, hidden_dim, output_dim):
    """Deterministic init matching the torch module's layer shapes (f32)."""
    dims = [
        (state_dim, hidden_dim),          # fc1
        (hidden_dim, hidden_dim // 2),    # fc2
        (hidden_dim // 2, hidden_dim),    # fc3
        (hidden_dim, hidden_dim // 2),    # fc4
        (hidden_dim // 2, hidden_dim),    # fc5
        (hidden_dim, output_dim),         # fc6
    ]
    params = []
    for (fan_in, fan_out) in dims:
        key, kw, kb = jax.random.split(key, 3)
        bound = 1.0 / jnp.sqrt(fan_in)
        w = jax.random.uniform(kw, (fan_in, fan_out), jnp.float32, -bound, bound)
        b = jax.random.uniform(kb, (1, fan_out), jnp.float32, -bound, bound)
        params += [w, b]
    return tuple(params)


def reference_forward(x, params):
    """Pure-JAX f32 reference matching the torch module exactly."""
    w1, b1, w2, b2, w3, b3, w4, b4, w5, b5, w6, b6 = params
    h = jax.nn.relu(x @ w1 + b1)
    out = h
    h = jax.nn.relu(h @ w2 + b2)
    h = jax.nn.relu(h @ w3 + b3)
    out = out + h
    h = jax.nn.relu(out @ w4 + b4)
    h = jax.nn.relu(h @ w5 + b5)
    x6 = out + h
    return jax.nn.softmax(x6 @ w6 + b6, axis=-1)


# TODO(synk): get_action / get_prob / compute_entropy (Categorical sampling,
# log-prob, entropy) are host-side utilities around forward() and are left in
# plain JAX rather than kernelized.

if __name__ == "__main__":
    state_dim, hidden_dim, output_dim = 16, 32, 8
    batch = 4

    key = jax.random.PRNGKey(0)
    key, kx = jax.random.split(key)
    x = jax.random.normal(kx, (batch, state_dim), jnp.float32)
    params = init_params(key, state_dim, hidden_dim, output_dim)

    padded_params = prepare_params(params)      # pad + cast once, off hot path
    probs = actor_forward(x, padded_params)
    probs = jax.block_until_ready(probs)

    # Sanity checks vs the pure-JAX f32 reference (bf16 fc1..fc5 weights ->
    # relaxed tolerance); exact divide means rows sum to 1 within f32 rounding.
    ref = reference_forward(x, params)
    assert probs.shape == (batch, output_dim)
    assert jnp.allclose(probs, ref, atol=2e-2, rtol=2e-2), (
        f"max abs err {float(jnp.max(jnp.abs(probs - ref)))}")
    assert jnp.allclose(jnp.sum(probs, axis=-1), 1.0, atol=1e-3)

    print("KERNEL_OK")
</pallas_src>

<mosaic_0001>
module attributes {stable_mosaic.version = 11 : i64} {
  func.func @actor_kernel(%arg0: i32, %arg1: memref<8x16xf32, #tpu.memory_space<vmem>>, %arg2: memref<16x128xbf16, #tpu.memory_space<vmem>>, %arg3: memref<1x128xf32, #tpu.memory_space<vmem>>, %arg4: memref<128x128xbf16, #tpu.memory_space<vmem>>, %arg5: memref<1x128xf32, #tpu.memory_space<vmem>>, %arg6: memref<128x128xbf16, #tpu.memory_space<vmem>>, %arg7: memref<1x128xf32, #tpu.memory_space<vmem>>, %arg8: memref<128x128xbf16, #tpu.memory_space<vmem>>, %arg9: memref<1x128xf32, #tpu.memory_space<vmem>>, %arg10: memref<128x128xbf16, #tpu.memory_space<vmem>>, %arg11: memref<1x128xf32, #tpu.memory_space<vmem>>, %arg12: memref<128x8xf32, #tpu.memory_space<vmem>>, %arg13: memref<1x8xf32, #tpu.memory_space<vmem>>, %arg14: memref<8x8xf32, #tpu.memory_space<vmem>>) attributes {dimension_semantics = [#tpu.dimension_semantics<parallel>], iteration_bounds = array<i64: 1>, scalar_prefetch = 0 : i64, scratch_operands = 0 : i64, tpu.core_type = #tpu.core_type<tc>, window_params = [{transform_indices = @transform_0, window_bounds = array<i64: 8, 16>}, {pipeline_mode = #tpu.pipeline_mode<synchronous>, transform_indices = @transform_1, window_bounds = array<i64: 16, 128>}, {pipeline_mode = #tpu.pipeline_mode<synchronous>, transform_indices = @transform_2, window_bounds = array<i64: 1, 128>}, {pipeline_mode = #tpu.pipeline_mode<synchronous>, transform_indices = @transform_3, window_bounds = array<i64: 128, 128>}, {pipeline_mode = #tpu.pipeline_mode<synchronous>, transform_indices = @transform_4, window_bounds = array<i64: 1, 128>}, {pipeline_mode = #tpu.pipeline_mode<synchronous>, transform_indices = @transform_5, window_bounds = array<i64: 128, 128>}, {pipeline_mode = #tpu.pipeline_mode<synchronous>, transform_indices = @transform_6, window_bounds = array<i64: 1, 128>}, {pipeline_mode = #tpu.pipeline_mode<synchronous>, transform_indices = @transform_7, window_bounds = array<i64: 128, 128>}, {pipeline_mode = #tpu.pipeline_mode<synchronous>, transform_indices = @transform_8, window_bounds = array<i64: 1, 128>}, {pipeline_mode = #tpu.pipeline_mode<synchronous>, transform_indices = @transform_9, window_bounds = array<i64: 128, 128>}, {pipeline_mode = #tpu.pipeline_mode<synchronous>, transform_indices = @transform_10, window_bounds = array<i64: 1, 128>}, {pipeline_mode = #tpu.pipeline_mode<synchronous>, transform_indices = @transform_11, window_bounds = array<i64: 128, 8>}, {pipeline_mode = #tpu.pipeline_mode<synchronous>, transform_indices = @transform_12, window_bounds = array<i64: 1, 8>}, {transform_indices = @transform_13, window_bounds = array<i64: 8, 8>}]} {
    %c0 = arith.constant 0 : index
    %c0_0 = arith.constant 0 : index
    %0 = vector.load %arg1[%c0, %c0_0] : memref<8x16xf32, #tpu.memory_space<vmem>>, vector<8x16xf32>
    %1 = arith.truncf %0 : vector<8x16xf32> to vector<8x16xbf16>
    %c0_1 = arith.constant 0 : index
    %c0_2 = arith.constant 0 : index
    %2 = vector.load %arg2[%c0_1, %c0_2] : memref<16x128xbf16, #tpu.memory_space<vmem>>, vector<16x128xbf16>
    %cst = arith.constant dense<0.000000e+00> : vector<8x128xf32>
    %3 = tpu.matmul %1, %2, %cst {dimension_numbers = #tpu.dot_dimension_numbers<[1], [0], [0], [1], [0, 0, 1, 1], [], []>} : vector<8x16xbf16>, vector<16x128xbf16>, vector<8x128xf32> -> vector<8x128xf32>
    %c0_3 = arith.constant 0 : index
    %c0_4 = arith.constant 0 : index
    %4 = vector.load %arg3[%c0_3, %c0_4] : memref<1x128xf32, #tpu.memory_space<vmem>>, vector<1x128xf32>
    %5 = vector.broadcast %4 : vector<1x128xf32> to vector<8x128xf32>
    %6 = arith.addf %3, %5 : vector<8x128xf32>
    %cst_5 = arith.constant 0.000000e+00 : f32
    %7 = vector.broadcast %cst_5 : f32 to vector<8x128xf32>
    %8 = arith.maximumf %6, %7 : vector<8x128xf32>
    %9 = arith.truncf %8 : vector<8x128xf32> to vector<8x128xbf16>
    %c0_6 = arith.constant 0 : index
    %c0_7 = arith.constant 0 : index
    %10 = vector.load %arg4[%c0_6, %c0_7] : memref<128x128xbf16, #tpu.memory_space<vmem>>, vector<128x128xbf16>
    %cst_8 = arith.constant dense<0.000000e+00> : vector<8x128xf32>
    %11 = tpu.matmul %9, %10, %cst_8 {dimension_numbers = #tpu.dot_dimension_numbers<[1], [0], [0], [1], [0, 0, 1, 1], [], []>} : vector<8x128xbf16>, vector<128x128xbf16>, vector<8x128xf32> -> vector<8x128xf32>
    %c0_9 = arith.constant 0 : index
    %c0_10 = arith.constant 0 : index
    %12 = vector.load %arg5[%c0_9, %c0_10] : memref<1x128xf32, #tpu.memory_space<vmem>>, vector<1x128xf32>
    %13 = vector.broadcast %12 : vector<1x128xf32> to vector<8x128xf32>
    %14 = arith.addf %11, %13 : vector<8x128xf32>
    %cst_11 = arith.constant 0.000000e+00 : f32
    %15 = vector.broadcast %cst_11 : f32 to vector<8x128xf32>
    %16 = arith.maximumf %14, %15 : vector<8x128xf32>
    %17 = arith.truncf %16 : vector<8x128xf32> to vector<8x128xbf16>
    %c0_12 = arith.constant 0 : index
    %c0_13 = arith.constant 0 : index
    %18 = vector.load %arg6[%c0_12, %c0_13] : memref<128x128xbf16, #tpu.memory_space<vmem>>, vector<128x128xbf16>
    %cst_14 = arith.constant dense<0.000000e+00> : vector<8x128xf32>
    %19 = tpu.matmul %17, %18, %cst_14 {dimension_numbers = #tpu.dot_dimension_numbers<[1], [0], [0], [1], [0, 0, 1, 1], [], []>} : vector<8x128xbf16>, vector<128x128xbf16>, vector<8x128xf32> -> vector<8x128xf32>
    %c0_15 = arith.constant 0 : index
    %c0_16 = arith.constant 0 : index
    %20 = vector.load %arg7[%c0_15, %c0_16] : memref<1x128xf32, #tpu.memory_space<vmem>>, vector<1x128xf32>
    %21 = vector.broadcast %20 : vector<1x128xf32> to vector<8x128xf32>
    %22 = arith.addf %19, %21 : vector<8x128xf32>
    %cst_17 = arith.constant 0.000000e+00 : f32
    %23 = vector.broadcast %cst_17 : f32 to vector<8x128xf32>
    %24 = arith.maximumf %22, %23 : vector<8x128xf32>
    %25 = arith.addf %8, %24 : vector<8x128xf32>
    %26 = arith.truncf %25 : vector<8x128xf32> to vector<8x128xbf16>
    %c0_18 = arith.constant 0 : index
    %c0_19 = arith.constant 0 : index
    %27 = vector.load %arg8[%c0_18, %c0_19] : memref<128x128xbf16, #tpu.memory_space<vmem>>, vector<128x128xbf16>
    %cst_20 = arith.constant dense<0.000000e+00> : vector<8x128xf32>
    %28 = tpu.matmul %26, %27, %cst_20 {dimension_numbers = #tpu.dot_dimension_numbers<[1], [0], [0], [1], [0, 0, 1, 1], [], []>} : vector<8x128xbf16>, vector<128x128xbf16>, vector<8x128xf32> -> vector<8x128xf32>
    %c0_21 = arith.constant 0 : index
    %c0_22 = arith.constant 0 : index
    %29 = vector.load %arg9[%c0_21, %c0_22] : memref<1x128xf32, #tpu.memory_space<vmem>>, vector<1x128xf32>
    %30 = vector.broadcast %29 : vector<1x128xf32> to vector<8x128xf32>
    %31 = arith.addf %28, %30 : vector<8x128xf32>
    %cst_23 = arith.constant 0.000000e+00 : f32
    %32 = vector.broadcast %cst_23 : f32 to vector<8x128xf32>
    %33 = arith.maximumf %31, %32 : vector<8x128xf32>
    %34 = arith.truncf %33 : vector<8x128xf32> to vector<8x128xbf16>
    %c0_24 = arith.constant 0 : index
    %c0_25 = arith.constant 0 : index
    %35 = vector.load %arg10[%c0_24, %c0_25] : memref<128x128xbf16, #tpu.memory_space<vmem>>, vector<128x128xbf16>
    %cst_26 = arith.constant dense<0.000000e+00> : vector<8x128xf32>
    %36 = tpu.matmul %34, %35, %cst_26 {dimension_numbers = #tpu.dot_dimension_numbers<[1], [0], [0], [1], [0, 0, 1, 1], [], []>} : vector<8x128xbf16>, vector<128x128xbf16>, vector<8x128xf32> -> vector<8x128xf32>
    %c0_27 = arith.constant 0 : index
    %c0_28 = arith.constant 0 : index
    %37 = vector.load %arg11[%c0_27, %c0_28] : memref<1x128xf32, #tpu.memory_space<vmem>>, vector<1x128xf32>
    %38 = vector.broadcast %37 : vector<1x128xf32> to vector<8x128xf32>
    %39 = arith.addf %36, %38 : vector<8x128xf32>
    %cst_29 = arith.constant 0.000000e+00 : f32
    %40 = vector.broadcast %cst_29 : f32 to vector<8x128xf32>
    %41 = arith.maximumf %39, %40 : vector<8x128xf32>
    %42 = arith.addf %25, %41 : vector<8x128xf32>
    %c0_30 = arith.constant 0 : index
    %c0_31 = arith.constant 0 : index
    %43 = vector.load %arg12[%c0_30, %c0_31] : memref<128x8xf32, #tpu.memory_space<vmem>>, vector<128x8xf32>
    %cst_32 = arith.constant dense<0.000000e+00> : vector<8x8xf32>
    %44 = tpu.matmul %42, %43, %cst_32 {dimension_numbers = #tpu.dot_dimension_numbers<[1], [0], [0], [1], [0, 0, 1, 1], [], []>} : vector<8x128xf32>, vector<128x8xf32>, vector<8x8xf32> -> vector<8x8xf32>
    %c0_33 = arith.constant 0 : index
    %c0_34 = arith.constant 0 : index
    %45 = vector.load %arg13[%c0_33, %c0_34] : memref<1x8xf32, #tpu.memory_space<vmem>>, vector<1x8xf32>
    %46 = vector.broadcast %45 : vector<1x8xf32> to vector<8x8xf32>
    %47 = arith.addf %44, %46 : vector<8x8xf32>
    %cst_35 = arith.constant dense<0xFF800000> : vector<8xf32>
    %48 = vector.multi_reduction <maximumf>, %47, %cst_35 [1] : vector<8x8xf32> to vector<8xf32>
    %49 = vector.shape_cast %48 : vector<8xf32> to vector<8x1xf32>
    %50 = vector.broadcast %49 : vector<8x1xf32> to vector<8x8xf32>
    %51 = arith.subf %47, %50 : vector<8x8xf32>
    %52 = math.exp %51 : vector<8x8xf32>
    %cst_36 = arith.constant dense<0.000000e+00> : vector<8xf32>
    %53 = vector.multi_reduction <add>, %52, %cst_36 [1] : vector<8x8xf32> to vector<8xf32>
    %54 = vector.shape_cast %53 : vector<8xf32> to vector<8x1xf32>
    %55 = vector.broadcast %54 : vector<8x1xf32> to vector<8x8xf32>
    %56 = arith.divf %52, %55 : vector<8x8xf32>
    %c0_37 = arith.constant 0 : index
    %c0_38 = arith.constant 0 : index
    %57 = vector.load %arg14[%c0_37, %c0_38] : memref<8x8xf32, #tpu.memory_space<vmem>>, vector<8x8xf32>
    tpu.vector_store %arg14[%c0_37, %c0_38], %56 {strides = array<i32>} : memref<8x8xf32, #tpu.memory_space<vmem>>, vector<8x8xf32>,
    return
  }
  func.func @transform_0(%arg0: i32) -> (i32, i32) {
    %c0_i32 = arith.constant 0 : i32
    %c0_i32_0 = arith.constant 0 : i32
    return %arg0, %c0_i32 : i32, i32
  }
  func.func @transform_1(%arg0: i32) -> (i32, i32) {
    %c0_i32 = arith.constant 0 : i32
    %c0_i32_0 = arith.constant 0 : i32
    %c0_i32_1 = arith.constant 0 : i32
    return %c0_i32, %c0_i32_0 : i32, i32
  }
  func.func @transform_2(%arg0: i32) -> (i32, i32) {
    %c0_i32 = arith.constant 0 : i32
    %c0_i32_0 = arith.constant 0 : i32
    %c0_i32_1 = arith.constant 0 : i32
    return %c0_i32, %c0_i32_0 : i32, i32
  }
  func.func @transform_3(%arg0: i32) -> (i32, i32) {
    %c0_i32 = arith.constant 0 : i32
    %c0_i32_0 = arith.constant 0 : i32
    %c0_i32_1 = arith.constant 0 : i32
    return %c0_i32, %c0_i32_0 : i32, i32
  }
  func.func @transform_4(%arg0: i32) -> (i32, i32) {
    %c0_i32 = arith.constant 0 : i32
    %c0_i32_0 = arith.constant 0 : i32
    %c0_i32_1 = arith.constant 0 : i32
    return %c0_i32, %c0_i32_0 : i32, i32
  }
  func.func @transform_5(%arg0: i32) -> (i32, i32) {
    %c0_i32 = arith.constant 0 : i32
    %c0_i32_0 = arith.constant 0 : i32
    %c0_i32_1 = arith.constant 0 : i32
    return %c0_i32, %c0_i32_0 : i32, i32
  }
  func.func @transform_6(%arg0: i32) -> (i32, i32) {
    %c0_i32 = arith.constant 0 : i32
    %c0_i32_0 = arith.constant 0 : i32
    %c0_i32_1 = arith.constant 0 : i32
    return %c0_i32, %c0_i32_0 : i32, i32
  }
  func.func @transform_7(%arg0: i32) -> (i32, i32) {
    %c0_i32 = arith.constant 0 : i32
    %c0_i32_0 = arith.constant 0 : i32
    %c0_i32_1 = arith.constant 0 : i32
    return %c0_i32, %c0_i32_0 : i32, i32
  }
  func.func @transform_8(%arg0: i32) -> (i32, i32) {
    %c0_i32 = arith.constant 0 : i32
    %c0_i32_0 = arith.constant 0 : i32
    %c0_i32_1 = arith.constant 0 : i32
    return %c0_i32, %c0_i32_0 : i32, i32
  }
  func.func @transform_9(%arg0: i32) -> (i32, i32) {
    %c0_i32 = arith.constant 0 : i32
    %c0_i32_0 = arith.constant 0 : i32
    %c0_i32_1 = arith.constant 0 : i32
    return %c0_i32, %c0_i32_0 : i32, i32
  }
  func.func @transform_10(%arg0: i32) -> (i32, i32) {
    %c0_i32 = arith.constant 0 : i32
    %c0_i32_0 = arith.constant 0 : i32
    %c0_i32_1 = arith.constant 0 : i32
    return %c0_i32, %c0_i32_0 : i32, i32
  }
  func.func @transform_11(%arg0: i32) -> (i32, i32) {
    %c0_i32 = arith.constant 0 : i32
    %c0_i32_0 = arith.constant 0 : i32
    %c0_i32_1 = arith.constant 0 : i32
    return %c0_i32, %c0_i32_0 : i32, i32
  }
  func.func @transform_12(%arg0: i32) -> (i32, i32) {
    %c0_i32 = arith.constant 0 : i32
    %c0_i32_0 = arith.constant 0 : i32
    %c0_i32_1 = arith.constant 0 : i32
    return %c0_i32, %c0_i32_0 : i32, i32
  }
  func.func @transform_13(%arg0: i32) -> (i32, i32) {
    %c0_i32 = arith.constant 0 : i32
    %c0_i32_0 = arith.constant 0 : i32
    return %arg0, %c0_i32 : i32, i32
  }
}

</mosaic_0001>

<llo_original>
// kernel: actor_forward.1
$region0: #{actor_forward.1}
  #allocation0 [shape = 'u32[]', space=smem, size = 0x4, offset = 0x4, fixed_abs, tag = 'smem constant byte address 0x4 - core index']
  #allocation1 [shape = 'u32[144,128]{1,0:T(1,128)}', space=vmem, size = 0x12000, scoped, tag = 'internal scratch']
  %s0 = inlined_call_operand.vmem [shape: f32[8,16], index: 0, kind: input, shape index: {}]
  %s1 = inlined_call_operand.vmem [shape: bf16[16,128], index: 1, kind: input, shape index: {}]
  %s2 = inlined_call_operand.vmem [shape: f32[1,128], index: 2, kind: input, shape index: {}]
  %s3 = inlined_call_operand.vmem [shape: bf16[128,128], index: 3, kind: input, shape index: {}]
  %s4 = inlined_call_operand.vmem [shape: f32[1,128], index: 4, kind: input, shape index: {}]
  %s5 = inlined_call_operand.vmem [shape: bf16[128,128], index: 5, kind: input, shape index: {}]
  %s6 = inlined_call_operand.vmem [shape: f32[1,128], index: 6, kind: input, shape index: {}]
  %s7 = inlined_call_operand.hbm [shape: bf16[128,128], index: 7, kind: input, shape index: {}]
  %s8 = inlined_call_operand.vmem [shape: f32[1,128], index: 8, kind: input, shape index: {}]
  %s9 = inlined_call_operand.hbm [shape: bf16[128,128], index: 9, kind: input, shape index: {}]
  %s10 = inlined_call_operand.vmem [shape: f32[1,128], index: 10, kind: input, shape index: {}]
  %s11 = inlined_call_operand.vmem [shape: f32[128,8], index: 11, kind: input, shape index: {}]
  %s12 = inlined_call_operand.vmem [shape: f32[1,8], index: 12, kind: input, shape index: {}]
  %s13 = inlined_call_operand.vmem [shape: f32[8,8], index: 13, kind: output, shape index: {}]
  %s14 = sld [smem:[#allocation0]]
  $region70: #{actor_forward.1} parent=0
    _
  %s16 = ssub.s32 1, %s14
  %s17 = scalar_select 0, %s16, %s14
  $region1: #{actor_forward.1} parent=0
    #allocation2 [shape = 'u8[32768]{0}', space=vmem, size = 0x8000, scoped, tag = 'input window, operand 7, single buffered']
    #allocation3 [shape = 's32[1]{0}', space=sflag, size = 0x4, scoped, tag = 'scoped memory for actor_forward.1']
    #allocation4 [shape = 'u8[32768]{0}', space=vmem, size = 0x8000, scoped, tag = 'input window, operand 9, single buffered']
    #allocation5 [shape = 's32[1]{0}', space=sflag, size = 0x4, scoped, tag = 'scoped memory for actor_forward.1']
    %18 = vsyncpa [#allocation3], 0
    %19 = vsyncpa [#allocation5], 0
    // Predicated region
    $region2: #{actor_forward.1} parent=1 // pred_check
      _
    $region3: #{actor_forward.1} parent=1 // pred_check_branch
      %21 = sbr.rel (0) target = $region5
    $region4: #{actor_forward.1} parent=1 // pred_region
      _
    $region5: #{actor_forward.1} parent=1 // pred_fallthru
      _
    // Predicated region
    $region6: #{actor_forward.1} parent=1 // pred_check
      _
    $region7: #{actor_forward.1} parent=1 // pred_check_branch
      %23 = sbr.rel (0) target = $region9
    $region8: #{actor_forward.1} parent=1 // pred_region
      _
    $region9: #{actor_forward.1} parent=1 // pred_fallthru
      _
    // Predicated region
    $region10: #{actor_forward.1} parent=1 // pred_check
      _
    $region11: #{actor_forward.1} parent=1 // pred_check_branch
      %25 = sbr.rel (0) target = $region13
    $region12: #{actor_forward.1} parent=1 // pred_region
      _
    $region13: #{actor_forward.1} parent=1 // pred_fallthru
      _
    // Predicated region
    $region14: #{actor_forward.1} parent=1 // pred_check
      _
    $region15: #{actor_forward.1} parent=1 // pred_check_branch
      %27 = sbr.rel (0) target = $region17
    $region16: #{actor_forward.1} parent=1 // pred_region
      _
    $region17: #{actor_forward.1} parent=1 // pred_fallthru
      _
    // Predicated region
    $region18: #{actor_forward.1} parent=1 // pred_check
      _
    $region19: #{actor_forward.1} parent=1 // pred_check_branch
      %29 = sbr.rel (0) target = $region21
    $region20: #{actor_forward.1} parent=1 // pred_region
      _
    $region21: #{actor_forward.1} parent=1 // pred_fallthru
      _
    // Predicated region
    $region22: #{actor_forward.1} parent=1 // pred_check
      _
    $region23: #{actor_forward.1} parent=1 // pred_check_branch
      %31 = sbr.rel (0) target = $region25
    $region24: #{actor_forward.1} parent=1 // pred_region
      _
    $region25: #{actor_forward.1} parent=1 // pred_fallthru
      _
    // Predicated region
    $region26: #{actor_forward.1} parent=1 // pred_check
      _
    $region27: #{actor_forward.1} parent=1 // pred_check_branch
      %33 = sbr.rel (0) target = $region29
    $region28: #{actor_forward.1} parent=1 // pred_region
      _
    $region29: #{actor_forward.1} parent=1 // pred_fallthru
      _
    // Predicated region
    $region30: #{actor_forward.1} parent=1 // pred_check
      _
    $region31: #{actor_forward.1} parent=1 // pred_check_branch
      %35 = sbr.rel (0) target = $region33
    $region32: #{actor_forward.1} parent=1 // pred_region
      %s37 = ssub.s32 1024, 1024
      %38 = vsyncadd [#allocation3], %s37
      %s39 = sshll.u32 [#allocation2], 4
      %s40 = int_to_ptr.vmem [resolvable:$true] %s39
      %45 = dma.hbm_to_vmem [thread:$0]  %s7, 1024, %s40, [#allocation3], 64, 64, 4
    $region33: #{actor_forward.1} parent=1 // pred_fallthru
      _
    // Predicated region
    $region34: #{actor_forward.1} parent=1 // pred_check
      _
    $region35: #{actor_forward.1} parent=1 // pred_check_branch
      %47 = sbr.rel (0) target = $region37
    $region36: #{actor_forward.1} parent=1 // pred_region
      _
    $region37: #{actor_forward.1} parent=1 // pred_fallthru
      _
    // Predicated region
    $region38: #{actor_forward.1} parent=1 // pred_check
      _
    $region39: #{actor_forward.1} parent=1 // pred_check_branch
      %49 = sbr.rel (0) target = $region41
    $region40: #{actor_forward.1} parent=1 // pred_region
      %s51 = ssub.s32 1024, 1024
      %52 = vsyncadd [#allocation5], %s51
      %s53 = sshll.u32 [#allocation4], 4
      %s54 = int_to_ptr.vmem [resolvable:$true] %s53
      %59 = dma.hbm_to_vmem [thread:$0]  %s9, 1024, %s54, [#allocation5], 64, 64, 4
    $region41: #{actor_forward.1} parent=1 // pred_fallthru
      _
    // Predicated region
    $region42: #{actor_forward.1} parent=1 // pred_check
      _
    $region43: #{actor_forward.1} parent=1 // pred_check_branch
      %61 = sbr.rel (0) target = $region45
    $region44: #{actor_forward.1} parent=1 // pred_region
      _
    $region45: #{actor_forward.1} parent=1 // pred_fallthru
      _
    // Predicated region
    $region46: #{actor_forward.1} parent=1 // pred_check
      _
    $region47: #{actor_forward.1} parent=1 // pred_check_branch
      %63 = sbr.rel (0) target = $region49
    $region48: #{actor_forward.1} parent=1 // pred_region
      _
    $region49: #{actor_forward.1} parent=1 // pred_fallthru
      _
    // Predicated region
    $region50: #{actor_forward.1} parent=1 // pred_check
      _
    $region51: #{actor_forward.1} parent=1 // pred_check_branch
      %65 = sbr.rel (0) target = $region53
    $region52: #{actor_forward.1} parent=1 // pred_region
      _
    $region53: #{actor_forward.1} parent=1 // pred_fallthru
      _
    // Predicated region
    $region54: #{actor_forward.1} parent=1 // pred_check
      _
    $region55: #{actor_forward.1} parent=1 // pred_check_branch
      %67 = sbr.rel (0) target = $region57
    $region56: #{actor_forward.1} parent=1 // pred_region
      %68 = dma.done [#allocation3], 1024
    $region57: #{actor_forward.1} parent=1 // pred_fallthru
      _
    // Predicated region
    $region58: #{actor_forward.1} parent=1 // pred_check
      _
    $region59: #{actor_forward.1} parent=1 // pred_check_branch
      %70 = sbr.rel (0) target = $region61
    $region60: #{actor_forward.1} parent=1 // pred_region
      %71 = dma.done [#allocation5], 1024
    $region61: #{actor_forward.1} parent=1 // pred_fallthru
      _
    %v73 = vld [vmem:[%s0] sm:$0xff]
    %v74 = vpack.c.bf16 %v73, %v73
    %v75 = vld [vmem:[%s1] sm:$0xf]
    %v76 = vld [vmem:[%s1 + $0x4] sm:$0xf]
    %v77 = vld [vmem:[%s2] sm:$0x1]
    %v79 = vlaneseq
    %v80 = vshrl.u32 %v79, 7
    %v81 = vsub.s32 0, %v80
    %v82 = vrot.slane %v77, %v81
    %v86 = vunpack.c.l.b16 %v75
    %v87 = vunpack.c.l.b16 %v76
    %v88 = vpack.c.b16 %v87, %v86
    %vm90 = vcmask 130048
    %v92 = vsel %vm90, %v74, 0
    %94 = vmatprep.subr.bf16.mxu0 0
    %95 = vmatpush1.bf16.msra.mxu0 0
    %96 = vmatprep.subr.bf16.mxu0 0
    %97 = vmatpush1.bf16.msra.mxu0 0
    %98 = vmatprep.subr.bf16.mxu0 0
    %99 = vmatpush1.bf16.msra.mxu0 0
    %100 = vmatprep.subr.bf16.mxu0 0
    %101 = vmatpush1.bf16.msra.mxu0 0
    %102 = vmatprep.subr.bf16.mxu0 0
    %103 = vmatpush1.bf16.msra.mxu0 0
    %104 = vmatprep.subr.bf16.mxu0 0
    %105 = vmatpush1.bf16.msra.mxu0 0
    %106 = vmatprep.subr.bf16.mxu0 0
    %107 = vmatpush1.bf16.msra.mxu0 0
    %108 = vmatprep.subr.bf16.mxu0 0
    %109 = vmatpush1.bf16.msra.mxu0 %v88
    %110 = vmatprep.subr.bf16.mxu0 0
    %111 = vmatpush2.bf16.msra.mxu0 0
    %112 = vmatprep.subr.bf16.mxu0 0
    %113 = vmatpush2.bf16.msra.mxu0 0
    %114 = vmatprep.subr.bf16.mxu0 0
    %115 = vmatpush2.bf16.msra.mxu0 0
    %116 = vmatprep.subr.bf16.mxu0 0
    %117 = vmatpush2.bf16.msra.mxu0 0
    %118 = vmatprep.subr.bf16.mxu0 0
    %119 = vmatpush2.bf16.msra.mxu0 0
    %120 = vmatprep.subr.bf16.mxu0 0
    %121 = vmatpush2.bf16.msra.mxu0 0
    %122 = vmatprep.subr.bf16.mxu0 0
    %123 = vmatpush2.bf16.msra.mxu0 0
    %124 = vmatprep.subr.bf16.mxu0 0
    %125 = vmatpush2.bf16.msra.mxu0 0
    %126 = vmatprep.mubr.bf16.mxu0 0
    %127 = vmatmul.mubr.bf16.gmra.mxu0 %v92
    %v128 = vpop.f32.mrf.mxu0
    %v129 = vadd.f32 %v82, %v128
    %v130 = vpop.f32.mrf.mxu0
    %v131 = vpop.f32.mrf.mxu0
    %v132 = vpop.f32.mrf.mxu0
    %133 = vdwg.mxu0
    %v134 = vmax.f32 %v129, 0.0
    %v135 = vpack.c.bf16 %v134, %v134
    %v136 = vld [vmem:[%s3] sm:$0xf]
    %v137 = vld [vmem:[%s3 + $0x4] sm:$0xf]
    %v138 = vld [vmem:[%s3 + $0x8] sm:$0xf]
    %v139 = vld [vmem:[%s3 + $0xc] sm:$0xf]
    %v140 = vld [vmem:[%s3 + $0x10] sm:$0xf]
    %v141 = vld [vmem:[%s3 + $0x14] sm:$0xf]
    %v142 = vld [vmem:[%s3 + $0x18] sm:$0xf]
    %v143 = vld [vmem:[%s3 + $0x1c] sm:$0xf]
    %v144 = vld [vmem:[%s3 + $0x20] sm:$0xf]
    %v145 = vld [vmem:[%s3 + $0x24] sm:$0xf]
    %v146 = vld [vmem:[%s3 + $0x28] sm:$0xf]
    %v147 = vld [vmem:[%s3 + $0x2c] sm:$0xf]
    %v148 = vld [vmem:[%s3 + $0x30] sm:$0xf]
    %v149 = vld [vmem:[%s3 + $0x34] sm:$0xf]
    %v150 = vld [vmem:[%s3 + $0x38] sm:$0xf]
    %v151 = vld [vmem:[%s3 + $0x3c] sm:$0xf]
    %v152 = vld [vmem:[%s4] sm:$0x1]
    %v154 = vlaneseq
    %v155 = vshrl.u32 %v154, 7
    %v156 = vsub.s32 0, %v155
    %v157 = vrot.slane %v152, %v156
    %v175 = vunpack.c.l.b16 %v136
    %v176 = vunpack.c.l.b16 %v137
    %v177 = vunpack.c.l.b16 %v138
    %v178 = vunpack.c.l.b16 %v139
    %v179 = vunpack.c.l.b16 %v140
    %v180 = vunpack.c.l.b16 %v141
    %v181 = vunpack.c.l.b16 %v142
    %v182 = vunpack.c.l.b16 %v143
    %v183 = vunpack.c.l.b16 %v144
    %v184 = vunpack.c.l.b16 %v145
    %v185 = vunpack.c.l.b16 %v146
    %v186 = vunpack.c.l.b16 %v147
    %v187 = vunpack.c.l.b16 %v148
    %v188 = vunpack.c.l.b16 %v149
    %v189 = vunpack.c.l.b16 %v150
    %v190 = vunpack.c.l.b16 %v151
    %v191 = vpack.c.b16 %v176, %v175
    %v192 = vpack.c.b16 %v178, %v177
    %v193 = vpack.c.b16 %v180, %v179
    %v194 = vpack.c.b16 %v182, %v181
    %v195 = vpack.c.b16 %v184, %v183
    %v196 = vpack.c.b16 %v186, %v185
    %v197 = vpack.c.b16 %v188, %v187
    %v198 = vpack.c.b16 %v190, %v189
    %207 = vmatprep.subr.bf16.mxu0 0
    %208 = vmatpush1.bf16.msra.mxu0 %v198
    %209 = vmatprep.subr.bf16.mxu0 0
    %210 = vmatpush1.bf16.msra.mxu0 %v197
    %211 = vmatprep.subr.bf16.mxu0 0
    %212 = vmatpush1.bf16.msra.mxu0 %v196
    %213 = vmatprep.subr.bf16.mxu0 0
    %214 = vmatpush1.bf16.msra.mxu0 %v195
    %215 = vmatprep.subr.bf16.mxu0 0
    %216 = vmatpush1.bf16.msra.mxu0 %v194
    %217 = vmatprep.subr.bf16.mxu0 0
    %218 = vmatpush1.bf16.msra.mxu0 %v193
    %219 = vmatprep.subr.bf16.mxu0 0
    %220 = vmatpush1.bf16.msra.mxu0 %v192
    %221 = vmatprep.subr.bf16.mxu0 0
    %222 = vmatpush1.bf16.msra.mxu0 %v191
    %223 = vmatprep.subr.bf16.mxu0 0
    %224 = vmatpush2.bf16.msra.mxu0 0
    %225 = vmatprep.subr.bf16.mxu0 0
    %226 = vmatpush2.bf16.msra.mxu0 0
    %227 = vmatprep.subr.bf16.mxu0 0
    %228 = vmatpush2.bf16.msra.mxu0 0
    %229 = vmatprep.subr.bf16.mxu0 0
    %230 = vmatpush2.bf16.msra.mxu0 0
    %231 = vmatprep.subr.bf16.mxu0 0
    %232 = vmatpush2.bf16.msra.mxu0 0
    %233 = vmatprep.subr.bf16.mxu0 0
    %234 = vmatpush2.bf16.msra.mxu0 0
    %235 = vmatprep.subr.bf16.mxu0 0
    %236 = vmatpush2.bf16.msra.mxu0 0
    %237 = vmatprep.subr.bf16.mxu0 0
    %238 = vmatpush2.bf16.msra.mxu0 0
    %239 = vmatprep.mubr.bf16.mxu0 0
    %240 = vmatmul.mubr.bf16.gmra.mxu0 %v135
    %v241 = vpop.f32.mrf.mxu0
    %v242 = vadd.f32 %v157, %v241
    %v243 = vpop.f32.mrf.mxu0
    %v244 = vpop.f32.mrf.mxu0
    %v245 = vpop.f32.mrf.mxu0
    %246 = vdwg.mxu0
    %v247 = vmax.f32 %v242, 0.0
    %v248 = vpack.c.bf16 %v247, %v247
    %v249 = vld [vmem:[%s5] sm:$0xf]
    %v250 = vld [vmem:[%s5 + $0x4] sm:$0xf]
    %v251 = vld [vmem:[%s5 + $0x8] sm:$0xf]
    %v252 = vld [vmem:[%s5 + $0xc] sm:$0xf]
    %v253 = vld [vmem:[%s5 + $0x10] sm:$0xf]
    %v254 = vld [vmem:[%s5 + $0x14] sm:$0xf]
    %v255 = vld [vmem:[%s5 + $0x18] sm:$0xf]
    %v256 = vld [vmem:[%s5 + $0x1c] sm:$0xf]
    %v257 = vld [vmem:[%s5 + $0x20] sm:$0xf]
    %v258 = vld [vmem:[%s5 + $0x24] sm:$0xf]
    %v259 = vld [vmem:[%s5 + $0x28] sm:$0xf]
    %v260 = vld [vmem:[%s5 + $0x2c] sm:$0xf]
    %v261 = vld [vmem:[%s5 + $0x30] sm:$0xf]
    %v262 = vld [vmem:[%s5 + $0x34] sm:$0xf]
    %v263 = vld [vmem:[%s5 + $0x38] sm:$0xf]
    %v264 = vld [vmem:[%s5 + $0x3c] sm:$0xf]
    %v265 = vld [vmem:[%s6] sm:$0x1]
    %v267 = vlaneseq
    %v268 = vshrl.u32 %v267, 7
    %v269 = vsub.s32 0, %v268
    %v270 = vrot.slane %v265, %v269
    %v288 = vunpack.c.l.b16 %v249
    %v289 = vunpack.c.l.b16 %v250
    %v290 = vunpack.c.l.b16 %v251
    %v291 = vunpack.c.l.b16 %v252
    %v292 = vunpack.c.l.b16 %v253
    %v293 = vunpack.c.l.b16 %v254
    %v294 = vunpack.c.l.b16 %v255
    %v295 = vunpack.c.l.b16 %v256
    %v296 = vunpack.c.l.b16 %v257
    %v297 = vunpack.c.l.b16 %v258
    %v298 = vunpack.c.l.b16 %v259
    %v299 = vunpack.c.l.b16 %v260
    %v300 = vunpack.c.l.b16 %v261
    %v301 = vunpack.c.l.b16 %v262
    %v302 = vunpack.c.l.b16 %v263
    %v303 = vunpack.c.l.b16 %v264
    %v304 = vpack.c.b16 %v289, %v288
    %v305 = vpack.c.b16 %v291, %v290
    %v306 = vpack.c.b16 %v293, %v292
    %v307 = vpack.c.b16 %v295, %v294
    %v308 = vpack.c.b16 %v297, %v296
    %v309 = vpack.c.b16 %v299, %v298
    %v310 = vpack.c.b16 %v301, %v300
    %v311 = vpack.c.b16 %v303, %v302
    %320 = vmatprep.subr.bf16.mxu0 0
    %321 = vmatpush1.bf16.msra.mxu0 %v311
    %322 = vmatprep.subr.bf16.mxu0 0
    %323 = vmatpush1.bf16.msra.mxu0 %v310
    %324 = vmatprep.subr.bf16.mxu0 0
    %325 = vmatpush1.bf16.msra.mxu0 %v309
    %326 = vmatprep.subr.bf16.mxu0 0
    %327 = vmatpush1.bf16.msra.mxu0 %v308
    %328 = vmatprep.subr.bf16.mxu0 0
    %329 = vmatpush1.bf16.msra.mxu0 %v307
    %330 = vmatprep.subr.bf16.mxu0 0
    %331 = vmatpush1.bf16.msra.mxu0 %v306
    %332 = vmatprep.subr.bf16.mxu0 0
    %333 = vmatpush1.bf16.msra.mxu0 %v305
    %334 = vmatprep.subr.bf16.mxu0 0
    %335 = vmatpush1.bf16.msra.mxu0 %v304
    %336 = vmatprep.subr.bf16.mxu0 0
    %337 = vmatpush2.bf16.msra.mxu0 0
    %338 = vmatprep.subr.bf16.mxu0 0
    %339 = vmatpush2.bf16.msra.mxu0 0
    %340 = vmatprep.subr.bf16.mxu0 0
    %341 = vmatpush2.bf16.msra.mxu0 0
    %342 = vmatprep.subr.bf16.mxu0 0
    %343 = vmatpush2.bf16.msra.mxu0 0
    %344 = vmatprep.subr.bf16.mxu0 0
    %345 = vmatpush2.bf16.msra.mxu0 0
    %346 = vmatprep.subr.bf16.mxu0 0
    %347 = vmatpush2.bf16.msra.mxu0 0
    %348 = vmatprep.subr.bf16.mxu0 0
    %349 = vmatpush2.bf16.msra.mxu0 0
    %350 = vmatprep.subr.bf16.mxu0 0
    %351 = vmatpush2.bf16.msra.mxu0 0
    %352 = vmatprep.mubr.bf16.mxu0 0
    %353 = vmatmul.mubr.bf16.gmra.mxu0 %v248
    %v354 = vpop.f32.mrf.mxu0
    %v355 = vadd.f32 %v270, %v354
    %v356 = vpop.f32.mrf.mxu0
    %v357 = vpop.f32.mrf.mxu0
    %v358 = vpop.f32.mrf.mxu0
    %359 = vdwg.mxu0
    %v360 = vmax.f32 %v355, 0.0
    %v361 = vadd.f32 %v134, %v360
    %v362 = vpack.c.bf16 %v361, %v361
    %v363 = vld [vmem:[#allocation2] sm:$0xf]
    %v364 = vld [vmem:[#allocation2 + $0x4] sm:$0xf]
    %v365 = vld [vmem:[#allocation2 + $0x8] sm:$0xf]
    %v366 = vld [vmem:[#allocation2 + $0xc] sm:$0xf]
    %v367 = vld [vmem:[#allocation2 + $0x10] sm:$0xf]
    %v368 = vld [vmem:[#allocation2 + $0x14] sm:$0xf]
    %v369 = vld [vmem:[#allocation2 + $0x18] sm:$0xf]
    %v370 = vld [vmem:[#allocation2 + $0x1c] sm:$0xf]
    %v371 = vld [vmem:[#allocation2 + $0x20] sm:$0xf]
    %v372 = vld [vmem:[#allocation2 + $0x24] sm:$0xf]
    %v373 = vld [vmem:[#allocation2 + $0x28] sm:$0xf]
    %v374 = vld [vmem:[#allocation2 + $0x2c] sm:$0xf]
    %v375 = vld [vmem:[#allocation2 + $0x30] sm:$0xf]
    %v376 = vld [vmem:[#allocation2 + $0x34] sm:$0xf]
    %v377 = vld [vmem:[#allocation2 + $0x38] sm:$0xf]
    %v378 = vld [vmem:[#allocation2 + $0x3c] sm:$0xf]
    %v379 = vld [vmem:[%s8] sm:$0x1]
    %v381 = vlaneseq
    %v382 = vshrl.u32 %v381, 7
    %v383 = vsub.s32 0, %v382
    %v384 = vrot.slane %v379, %v383
    %v402 = vunpack.c.l.b16 %v363
    %v403 = vunpack.c.l.b16 %v364
    %v404 = vunpack.c.l.b16 %v365
    %v405 = vunpack.c.l.b16 %v366
    %v406 = vunpack.c.l.b16 %v367
    %v407 = vunpack.c.l.b16 %v368
    %v408 = vunpack.c.l.b16 %v369
    %v409 = vunpack.c.l.b16 %v370
    %v410 = vunpack.c.l.b16 %v371
    %v411 = vunpack.c.l.b16 %v372
    %v412 = vunpack.c.l.b16 %v373
    %v413 = vunpack.c.l.b16 %v374
    %v414 = vunpack.c.l.b16 %v375
    %v415 = vunpack.c.l.b16 %v376
    %v416 = vunpack.c.l.b16 %v377
    %v417 = vunpack.c.l.b16 %v378
    %v418 = vpack.c.b16 %v403, %v402
    %v419 = vpack.c.b16 %v405, %v404
    %v420 = vpack.c.b16 %v407, %v406
    %v421 = vpack.c.b16 %v409, %v408
    %v422 = vpack.c.b16 %v411, %v410
    %v423 = vpack.c.b16 %v413, %v412
    %v424 = vpack.c.b16 %v415, %v414
    %v425 = vpack.c.b16 %v417, %v416
    %434 = vmatprep.subr.bf16.mxu0 0
    %435 = vmatpush1.bf16.msra.mxu0 %v425
    %436 = vmatprep.subr.bf16.mxu0 0
    %437 = vmatpush1.bf16.msra.mxu0 %v424
    %438 = vmatprep.subr.bf16.mxu0 0
    %439 = vmatpush1.bf16.msra.mxu0 %v423
    %440 = vmatprep.subr.bf16.mxu0 0
    %441 = vmatpush1.bf16.msra.mxu0 %v422
    %442 = vmatprep.subr.bf16.mxu0 0
    %443 = vmatpush1.bf16.msra.mxu0 %v421
    %444 = vmatprep.subr.bf16.mxu0 0
    %445 = vmatpush1.bf16.msra.mxu0 %v420
    %446 = vmatprep.subr.bf16.mxu0 0
    %447 = vmatpush1.bf16.msra.mxu0 %v419
    %448 = vmatprep.subr.bf16.mxu0 0
    %449 = vmatpush1.bf16.msra.mxu0 %v418
    %450 = vmatprep.subr.bf16.mxu0 0
    %451 = vmatpush2.bf16.msra.mxu0 0
    %452 = vmatprep.subr.bf16.mxu0 0
    %453 = vmatpush2.bf16.msra.mxu0 0
    %454 = vmatprep.subr.bf16.mxu0 0
    %455 = vmatpush2.bf16.msra.mxu0 0
    %456 = vmatprep.subr.bf16.mxu0 0
    %457 = vmatpush2.bf16.msra.mxu0 0
    %458 = vmatprep.subr.bf16.mxu0 0
    %459 = vmatpush2.bf16.msra.mxu0 0
    %460 = vmatprep.subr.bf16.mxu0 0
    %461 = vmatpush2.bf16.msra.mxu0 0
    %462 = vmatprep.subr.bf16.mxu0 0
    %463 = vmatpush2.bf16.msra.mxu0 0
    %464 = vmatprep.subr.bf16.mxu0 0
    %465 = vmatpush2.bf16.msra.mxu0 0
    %466 = vmatprep.mubr.bf16.mxu0 0
    %467 = vmatmul.mubr.bf16.gmra.mxu0 %v362
    %v468 = vpop.f32.mrf.mxu0
    %v469 = vadd.f32 %v384, %v468
    %v470 = vpop.f32.mrf.mxu0
    %v471 = vpop.f32.mrf.mxu0
    %v472 = vpop.f32.mrf.mxu0
    %473 = vdwg.mxu0
    %v474 = vmax.f32 %v469, 0.0
    %v475 = vpack.c.bf16 %v474, %v474
    %v476 = vld [vmem:[#allocation4] sm:$0xf]
    %v477 = vld [vmem:[#allocation4 + $0x4] sm:$0xf]
    %v478 = vld [vmem:[#allocation4 + $0x8] sm:$0xf]
    %v479 = vld [vmem:[#allocation4 + $0xc] sm:$0xf]
    %v480 = vld [vmem:[#allocation4 + $0x10] sm:$0xf]
    %v481 = vld [vmem:[#allocation4 + $0x14] sm:$0xf]
    %v482 = vld [vmem:[#allocation4 + $0x18] sm:$0xf]
    %v483 = vld [vmem:[#allocation4 + $0x1c] sm:$0xf]
    %v484 = vld [vmem:[#allocation4 + $0x20] sm:$0xf]
    %v485 = vld [vmem:[#allocation4 + $0x24] sm:$0xf]
    %v486 = vld [vmem:[#allocation4 + $0x28] sm:$0xf]
    %v487 = vld [vmem:[#allocation4 + $0x2c] sm:$0xf]
    %v488 = vld [vmem:[#allocation4 + $0x30] sm:$0xf]
    %v489 = vld [vmem:[#allocation4 + $0x34] sm:$0xf]
    %v490 = vld [vmem:[#allocation4 + $0x38] sm:$0xf]
    %v491 = vld [vmem:[#allocation4 + $0x3c] sm:$0xf]
    %v492 = vld [vmem:[%s10] sm:$0x1]
    %v494 = vlaneseq
    %v495 = vshrl.u32 %v494, 7
    %v496 = vsub.s32 0, %v495
    %v497 = vrot.slane %v492, %v496
    %v515 = vunpack.c.l.b16 %v476
    %v516 = vunpack.c.l.b16 %v477
    %v517 = vunpack.c.l.b16 %v478
    %v518 = vunpack.c.l.b16 %v479
    %v519 = vunpack.c.l.b16 %v480
    %v520 = vunpack.c.l.b16 %v481
    %v521 = vunpack.c.l.b16 %v482
    %v522 = vunpack.c.l.b16 %v483
    %v523 = vunpack.c.l.b16 %v484
    %v524 = vunpack.c.l.b16 %v485
    %v525 = vunpack.c.l.b16 %v486
    %v526 = vunpack.c.l.b16 %v487
    %v527 = vunpack.c.l.b16 %v488
    %v528 = vunpack.c.l.b16 %v489
    %v529 = vunpack.c.l.b16 %v490
    %v530 = vunpack.c.l.b16 %v491
    %v531 = vpack.c.b16 %v516, %v515
    %v532 = vpack.c.b16 %v518, %v517
    %v533 = vpack.c.b16 %v520, %v519
    %v534 = vpack.c.b16 %v522, %v521
    %v535 = vpack.c.b16 %v524, %v523
    %v536 = vpack.c.b16 %v526, %v525
    %v537 = vpack.c.b16 %v528, %v527
    %v538 = vpack.c.b16 %v530, %v529
    %547 = vmatprep.subr.bf16.mxu0 0
    %548 = vmatpush1.bf16.msra.mxu0 %v538
    %549 = vmatprep.subr.bf16.mxu0 0
    %550 = vmatpush1.bf16.msra.mxu0 %v537
    %551 = vmatprep.subr.bf16.mxu0 0
    %552 = vmatpush1.bf16.msra.mxu0 %v536
    %553 = vmatprep.subr.bf16.mxu0 0
    %554 = vmatpush1.bf16.msra.mxu0 %v535
    %555 = vmatprep.subr.bf16.mxu0 0
    %556 = vmatpush1.bf16.msra.mxu0 %v534
    %557 = vmatprep.subr.bf16.mxu0 0
    %558 = vmatpush1.bf16.msra.mxu0 %v533
    %559 = vmatprep.subr.bf16.mxu0 0
    %560 = vmatpush1.bf16.msra.mxu0 %v532
    %561 = vmatprep.subr.bf16.mxu0 0
    %562 = vmatpush1.bf16.msra.mxu0 %v531
    %563 = vmatprep.subr.bf16.mxu0 0
    %564 = vmatpush2.bf16.msra.mxu0 0
    %565 = vmatprep.subr.bf16.mxu0 0
    %566 = vmatpush2.bf16.msra.mxu0 0
    %567 = vmatprep.subr.bf16.mxu0 0
    %568 = vmatpush2.bf16.msra.mxu0 0
    %569 = vmatprep.subr.bf16.mxu0 0
    %570 = vmatpush2.bf16.msra.mxu0 0
    %571 = vmatprep.subr.bf16.mxu0 0
    %572 = vmatpush2.bf16.msra.mxu0 0
    %573 = vmatprep.subr.bf16.mxu0 0
    %574 = vmatpush2.bf16.msra.mxu0 0
    %575 = vmatprep.subr.bf16.mxu0 0
    %576 = vmatpush2.bf16.msra.mxu0 0
    %577 = vmatprep.subr.bf16.mxu0 0
    %578 = vmatpush2.bf16.msra.mxu0 0
    %579 = vmatprep.mubr.bf16.mxu0 0
    %580 = vmatmul.mubr.bf16.gmra.mxu0 %v475
    %v581 = vpop.f32.mrf.mxu0
    %v582 = vadd.f32 %v497, %v581
    %v583 = vpop.f32.mrf.mxu0
    %v584 = vpop.f32.mrf.mxu0
    %v585 = vpop.f32.mrf.mxu0
    %586 = vdwg.mxu0
    %v587 = vmax.f32 %v582, 0.0
    %v588 = vadd.f32 %v361, %v587
    %v589 = vld [vmem:[%s11] sm:$0xff]
    %v590 = vld [vmem:[%s11 + $0x8] sm:$0xff]
    %v591 = vld [vmem:[%s11 + $0x10] sm:$0xff]
    %v592 = vld [vmem:[%s11 + $0x18] sm:$0xff]
    %v593 = vld [vmem:[%s11 + $0x20] sm:$0xff]
    %v594 = vld [vmem:[%s11 + $0x28] sm:$0xff]
    %v595 = vld [vmem:[%s11 + $0x30] sm:$0xff]
    %v596 = vld [vmem:[%s11 + $0x38] sm:$0xff]
    %v597 = vld [vmem:[%s11 + $0x40] sm:$0xff]
    %v598 = vld [vmem:[%s11 + $0x48] sm:$0xff]
    %v599 = vld [vmem:[%s11 + $0x50] sm:$0xff]
    %v600 = vld [vmem:[%s11 + $0x58] sm:$0xff]
    %v601 = vld [vmem:[%s11 + $0x60] sm:$0xff]
    %v602 = vld [vmem:[%s11 + $0x68] sm:$0xff]
    %v603 = vld [vmem:[%s11 + $0x70] sm:$0xff]
    %v604 = vld [vmem:[%s11 + $0x78] sm:$0xff]
    %v605 = vld [vmem:[%s12] sm:$0x1]
    %v607 = vlaneseq
    %v608 = vshrl.u32 %v607, 7
    %v609 = vsub.s32 0, %v608
    %v610 = vrot.slane %v605, %v609
    %612 = vmatprep.subr.mxu0 0.0
    %613 = vmatpush1.msra.mxu0 %v604
    %614 = vmatprep.subr.mxu0 0.0
    %615 = vmatpush1.msra.mxu0 %v603
    %616 = vmatprep.subr.mxu0 0.0
    %617 = vmatpush1.msra.mxu0 %v602
    %618 = vmatprep.subr.mxu0 0.0
    %619 = vmatpush1.msra.mxu0 %v601
    %620 = vmatprep.subr.mxu0 0.0
    %621 = vmatpush1.msra.mxu0 %v600
    %622 = vmatprep.subr.mxu0 0.0
    %623 = vmatpush1.msra.mxu0 %v599
    %624 = vmatprep.subr.mxu0 0.0
    %625 = vmatpush1.msra.mxu0 %v598
    %626 = vmatprep.subr.mxu0 0.0
    %627 = vmatpush1.msra.mxu0 %v597
    %628 = vmatprep.subr.mxu0 0.0
    %629 = vmatpush1.msra.mxu0 %v596
    %630 = vmatprep.subr.mxu0 0.0
    %631 = vmatpush1.msra.mxu0 %v595
    %632 = vmatprep.subr.mxu0 0.0
    %633 = vmatpush1.msra.mxu0 %v594
    %634 = vmatprep.subr.mxu0 0.0
    %635 = vmatpush1.msra.mxu0 %v593
    %636 = vmatprep.subr.mxu0 0.0
    %637 = vmatpush1.msra.mxu0 %v592
    %638 = vmatprep.subr.mxu0 0.0
    %639 = vmatpush1.msra.mxu0 %v591
    %640 = vmatprep.subr.mxu0 0.0
    %641 = vmatpush1.msra.mxu0 %v590
    %642 = vmatprep.subr.mxu0 0.0
    %643 = vmatpush1.msra.mxu0 %v589
    %644 = vmatprep.subr.mxu0 0.0
    %645 = vmatpush2.msra.mxu0 0.0
    %646 = vmatprep.subr.mxu0 0.0
    %647 = vmatpush2.msra.mxu0 0.0
    %648 = vmatprep.subr.mxu0 0.0
    %649 = vmatpush2.msra.mxu0 0.0
    %650 = vmatprep.subr.mxu0 0.0
    %651 = vmatpush2.msra.mxu0 0.0
    %652 = vmatprep.subr.mxu0 0.0
    %653 = vmatpush2.msra.mxu0 0.0
    %654 = vmatprep.subr.mxu0 0.0
    %655 = vmatpush2.msra.mxu0 0.0
    %656 = vmatprep.subr.mxu0 0.0
    %657 = vmatpush2.msra.mxu0 0.0
    %658 = vmatprep.subr.mxu0 0.0
    %659 = vmatpush2.msra.mxu0 0.0
    %660 = vmatprep.subr.mxu0 0.0
    %661 = vmatpush2.msra.mxu0 0.0
    %662 = vmatprep.subr.mxu0 0.0
    %663 = vmatpush2.msra.mxu0 0.0
    %664 = vmatprep.subr.mxu0 0.0
    %665 = vmatpush2.msra.mxu0 0.0
    %666 = vmatprep.subr.mxu0 0.0
    %667 = vmatpush2.msra.mxu0 0.0
    %668 = vmatprep.subr.mxu0 0.0
    %669 = vmatpush2.msra.mxu0 0.0
    %670 = vmatprep.subr.mxu0 0.0
    %671 = vmatpush2.msra.mxu0 0.0
    %672 = vmatprep.subr.mxu0 0.0
    %673 = vmatpush2.msra.mxu0 0.0
    %674 = vmatprep.subr.mxu0 0.0
    %675 = vmatpush2.msra.mxu0 0.0
    %676 = vmatprep.mubr.f32.mxu0 0.0
    %677 = vmatmul.mubr.f32.gmra.mxu0 %v588
    %v678 = vpop.f32.mrf.mxu0
    %v679 = vadd.f32 %v610, %v678
    %v680 = vpop.f32.mrf.mxu0
    %681 = vdwg.mxu0
    %vm682 = vcmask 64512
    %v683 = vsel %vm682, %v679, -inf
    %684 = vmax.xlane.f32.xlu0 %v683
    %v685 = vpop.xlane.xlu0 %684
    %v686 = vsub.f32 %v679, %v685
    %v687 = vmul.f32 %v686, 1.442695
    %v688 = vpow.pop %v687
    %v689 = vsel %vm682, %v688, 0.0
    %690 = vadd.xlane.f32.xlu0 %v689
    %v691 = vpop.xlane.xlu0 %690
    %v692 = vrcp.pop %v691
    %v693 = vmul.f32 %v688, %v692
    %694 = vst.msk [vmem:[%s13] sm:$0xff] %vm682, %v693
    // Predicated region
    $region62: #{actor_forward.1} parent=1 // pred_check
      _
    $region63: #{actor_forward.1} parent=1 // pred_check_branch
      %696 = sbr.rel (0) target = $region65
    $region64: #{actor_forward.1} parent=1 // pred_region
      _
    $region65: #{actor_forward.1} parent=1 // pred_fallthru
      _
    // Predicated region
    $region66: #{actor_forward.1} parent=1 // pred_check
      _
    $region67: #{actor_forward.1} parent=1 // pred_check_branch
      %698 = sbr.rel (0) target = $region69
    $region68: #{actor_forward.1} parent=1 // pred_region
      _
    $region69: #{actor_forward.1} parent=1 // pred_fallthru
      _
    %699 = vsyncpa [#allocation3], 1
    %700 = vsyncpa [#allocation5], 1

</llo_original>
